<compile_context>
chip_gen: v7x
topology: tpu7x:2x2x1
jax: 0.10.0
libtpu: 0.0.40
codegen_flags: <defaults>
</compile_context>

<pallas_src>
import math

import numpy as np

import jax
import jax.numpy as jnp
from jax.experimental import pallas as pl
from jax.experimental.pallas import tpu as pltpu


def _round_up(x, m):
    return (x + m - 1) // m * m


def _clamp_tile_for_vmem(tile_rows, Kp, Np, in_itemsize, out_itemsize,
                         budget=24 << 20):
    """Keep double-buffered (x block + out block) under `budget` bytes."""
    per_row = 2 * (Kp * in_itemsize + Np * out_itemsize)
    max_rows = max(8, (budget // per_row) // 8 * 8)
    return min(tile_rows, max_rows)


def compose_kernel(xp_ref, w_ref, b_ref, o_ref):
    # Single fused affine map per node tile (packed, lane-dense layout).
    y = jnp.dot(xp_ref[...], w_ref[...], preferred_element_type=jnp.float32)
    o_ref[...] = (y + b_ref[...].astype(jnp.float32)).astype(o_ref.dtype)


def compose_forward(x, w1, b1, w2, b2, *, tile_rows=4096,
                    compute_dtype=jnp.bfloat16, out_dtype=None):
    """Compose(Linear(D_in->D_hid), Linear(D_hid->D_out)) fused into one kernel.

    tile_rows counts PACKED rows (pack nodes each).  The HBM-bound kernel reads
    x once, writes out once; operands default to bf16 (f32 accumulate).
    """
    N, D_in = x.shape
    D_out = w2.shape[1]
    out_dtype = out_dtype or x.dtype

    # Normalize bias shapes (a (D,) bias would silently change the fusion math).
    b1 = jnp.reshape(b1, (1, -1))
    b2 = jnp.reshape(b2, (1, -1))

    # --- wrapper-side algebraic fusion (exact: no nonlinearity between stages) ---
    hi = jax.lax.Precision.HIGHEST
    w = jnp.dot(w1, w2, precision=hi)            # (D_in, D_out)
    b = jnp.dot(b1, w2, precision=hi) + b2       # (1, D_out)

    # --- lane-dense packing: pack nodes per row so output lanes are 128-dense ---
    in_itemsize = np.dtype(compute_dtype).itemsize
    out_itemsize = np.dtype(out_dtype).itemsize
    pack = 128 // math.gcd(128, D_out)
    if pack > 1 and pack * pack * D_in * D_out * in_itemsize > (8 << 20):
        # Replicated block-diagonal weight would be too big: keep the output
        # lane-dense by zero-padding D_out to a multiple of 128 instead
        # (never fall back to masked sub-128-lane stores).
        pack = 1
        pad_cols = _round_up(D_out, 128) - D_out
        w = jnp.pad(w, ((0, 0), (0, pad_cols)))
        b = jnp.pad(b, ((0, 0), (0, pad_cols)))
    D_out_p = w.shape[1]
    Kp, Np = pack * D_in, pack * D_out_p

    w_blk = jnp.kron(jnp.eye(pack, dtype=w.dtype), w) if pack > 1 else w
    b_blk = jnp.tile(b, (1, pack)) if pack > 1 else b

    # --- node-axis packing: zero-copy reshape when N is a multiple of pack ---
    rows = pl.cdiv(N, pack)
    n_in = rows * pack
    xp = x if n_in == N else jnp.pad(x, ((0, n_in - N), (0, 0)))
    # TODO(synk): the < pack-row pad above still copies x; split off a remainder
    #             tile if that copy ever shows up for huge, misaligned N.
    xp = xp.reshape(rows, Kp)

    # --- tile selection: big tiles to amortize per-step overhead, but keep >=2
    #     "parallel" grid steps for mid/large N (v7x has 2 TensorCores). ---
    if rows >= 16:
        tile_rows = min(tile_rows, max(8, _round_up(pl.cdiv(rows, 2), 8)))
        tile_rows = _clamp_tile_for_vmem(tile_rows, Kp, Np,
                                         in_itemsize, out_itemsize)
    else:
        tile_rows = rows  # single block; row dim == full array dim (allowed)

    grid = (pl.cdiv(rows, tile_rows),)   # ragged last block handled by Pallas

    xp = xp.astype(compute_dtype)
    w_blk = w_blk.astype(compute_dtype)
    b_blk = b_blk.astype(compute_dtype)

    cost = pl.CostEstimate(
        flops=2 * rows * Kp * Np,
        transcendentals=0,
        bytes_accessed=(xp.size + w_blk.size + b_blk.size) * in_itemsize
                       + rows * Np * out_itemsize,
    )

    out_packed = pl.pallas_call(
        compose_kernel,
        out_shape=jax.ShapeDtypeStruct((rows, Np), out_dtype),
        grid_spec=pl.GridSpec(
            grid=grid,
            in_specs=[
                pl.BlockSpec((tile_rows, Kp), lambda i: (i, 0)),   # packed nodes
                pl.BlockSpec((Kp, Np), lambda i: (0, 0)),          # fused weight (resident)
                pl.BlockSpec((1, Np), lambda i: (0, 0)),           # fused bias (resident)
            ],
            out_specs=pl.BlockSpec((tile_rows, Np), lambda i: (i, 0)),
        ),
        compiler_params=pltpu.CompilerParams(
            dimension_semantics=("parallel",),
        ),
        cost_estimate=cost,
    )(xp, w_blk, b_blk)

    # Unpack: (rows, pack*D_out_p) -> (rows*pack, D_out_p) -> drop pad rows/cols.
    return out_packed.reshape(rows * pack, D_out_p)[:N, :D_out]


if __name__ == "__main__":
    # Small shapes consistent with a per-node feature pipeline.
    N, D_in, D_hid, D_out = 128, 32, 64, 16

    key = jax.random.PRNGKey(0)
    k_x, k_w1, k_b1, k_w2, k_b2, k_x2 = jax.random.split(key, 6)

    x = jax.random.normal(k_x, (N, D_in), dtype=jnp.float32)
    # Deterministic parameter init (synthetic weights, no checkpoint load).
    w1 = jax.random.normal(k_w1, (D_in, D_hid), dtype=jnp.float32) / jnp.sqrt(D_in)
    b1 = jax.random.normal(k_b1, (1, D_hid), dtype=jnp.float32) * 0.1
    w2 = jax.random.normal(k_w2, (D_hid, D_out), dtype=jnp.float32) / jnp.sqrt(D_hid)
    b2 = jax.random.normal(k_b2, (1, D_out), dtype=jnp.float32) * 0.1

    # Pure-JAX reference of Compose: second(first(x)).
    ref = (x @ w1 + b1) @ w2 + b2

    # 1) Default (bf16 operands, f32 accumulate) fast path.
    out_bf16 = jax.block_until_ready(compose_forward(x, w1, b1, w2, b2))
    assert out_bf16.shape == (N, D_out)
    assert out_bf16.dtype == x.dtype
    assert jnp.allclose(out_bf16, ref, atol=1e-1, rtol=1e-1), "bf16 path mismatch"

    # 2) f32 operand path for tight validation of the kernel logic.
    out_f32 = jax.block_until_ready(
        compose_forward(x, w1, b1, w2, b2, compute_dtype=jnp.float32))
    assert jnp.allclose(out_f32, ref, atol=2e-3, rtol=2e-3), "f32 path mismatch"

    # 3) Ragged N (not a multiple of the lane-pack nor of the row tile).
    N2 = 137
    x2 = jax.random.normal(k_x2, (N2, D_in), dtype=jnp.float32)
    ref2 = (x2 @ w1 + b1) @ w2 + b2
    out2 = jax.block_until_ready(compose_forward(x2, w1, b1, w2, b2))
    assert out2.shape == (N2, D_out)
    assert jnp.allclose(out2, ref2, atol=1e-1, rtol=1e-1), "ragged-N mismatch"

    print("KERNEL_OK")
</pallas_src>

<mosaic_0001>
module attributes {stable_mosaic.version = 11 : i64} {
  func.func @compose_kernel(%arg0: i32, %arg1: memref<8x256xbf16, #tpu.memory_space<vmem>>, %arg2: memref<256x128xbf16, #tpu.memory_space<vmem>>, %arg3: memref<1x128xbf16, #tpu.memory_space<vmem>>, %arg4: memref<8x128xf32, #tpu.memory_space<vmem>>) attributes {dimension_semantics = [#tpu.dimension_semantics<parallel>], iteration_bounds = array<i64: 2>, scalar_prefetch = 0 : i64, scratch_operands = 0 : i64, tpu.core_type = #tpu.core_type<tc>, window_params = [{transform_indices = @transform_0, window_bounds = array<i64: 8, 256>}, {pipeline_mode = #tpu.pipeline_mode<synchronous>, transform_indices = @transform_1, window_bounds = array<i64: 256, 128>}, {pipeline_mode = #tpu.pipeline_mode<synchronous>, transform_indices = @transform_2, window_bounds = array<i64: 1, 128>}, {transform_indices = @transform_3, window_bounds = array<i64: 8, 128>}]} {
    %c0 = arith.constant 0 : index
    %c0_0 = arith.constant 0 : index
    %0 = vector.load %arg1[%c0, %c0_0] : memref<8x256xbf16, #tpu.memory_space<vmem>>, vector<8x256xbf16>
    %c0_1 = arith.constant 0 : index
    %c0_2 = arith.constant 0 : index
    %1 = vector.load %arg2[%c0_1, %c0_2] : memref<256x128xbf16, #tpu.memory_space<vmem>>, vector<256x128xbf16>
    %cst = arith.constant dense<0.000000e+00> : vector<8x128xf32>
    %2 = tpu.matmul %0, %1, %cst {dimension_numbers = #tpu.dot_dimension_numbers<[1], [0], [0], [1], [0, 0, 1, 1], [], []>} : vector<8x256xbf16>, vector<256x128xbf16>, vector<8x128xf32> -> vector<8x128xf32>
    %c0_3 = arith.constant 0 : index
    %c0_4 = arith.constant 0 : index
    %3 = vector.load %arg3[%c0_3, %c0_4] : memref<1x128xbf16, #tpu.memory_space<vmem>>, vector<1x128xbf16>
    %4 = arith.extf %3 : vector<1x128xbf16> to vector<1x128xf32>
    %5 = vector.broadcast %4 : vector<1x128xf32> to vector<8x128xf32>
    %6 = arith.addf %2, %5 : vector<8x128xf32>
    %c0_5 = arith.constant 0 : index
    %c0_6 = arith.constant 0 : index
    %7 = vector.load %arg4[%c0_5, %c0_6] : memref<8x128xf32, #tpu.memory_space<vmem>>, vector<8x128xf32>
    tpu.vector_store %arg4[%c0_5, %c0_6], %6 {strides = array<i32>} : memref<8x128xf32, #tpu.memory_space<vmem>>, vector<8x128xf32>,
    return
  }
  func.func @transform_0(%arg0: i32) -> (i32, i32) {
    %c0_i32 = arith.constant 0 : i32
    %c0_i32_0 = arith.constant 0 : i32
    return %arg0, %c0_i32 : i32, i32
  }
  func.func @transform_1(%arg0: i32) -> (i32, i32) {
    %c0_i32 = arith.constant 0 : i32
    %c0_i32_0 = arith.constant 0 : i32
    %c0_i32_1 = arith.constant 0 : i32
    return %c0_i32, %c0_i32_0 : i32, i32
  }
  func.func @transform_2(%arg0: i32) -> (i32, i32) {
    %c0_i32 = arith.constant 0 : i32
    %c0_i32_0 = arith.constant 0 : i32
    %c0_i32_1 = arith.constant 0 : i32
    return %c0_i32, %c0_i32_0 : i32, i32
  }
  func.func @transform_3(%arg0: i32) -> (i32, i32) {
    %c0_i32 = arith.constant 0 : i32
    %c0_i32_0 = arith.constant 0 : i32
    return %arg0, %c0_i32 : i32, i32
  }
}

</mosaic_0001>

<llo_original>
// kernel: tpu_custom_call.1
$region0: #{tpu_custom_call.1}
  #allocation0 [shape = 'u32[]', space=smem, size = 0x4, offset = 0x4, fixed_abs, tag = 'smem constant byte address 0x4 - core index']
  #allocation1 [shape = 'u32[144,128]{1,0:T(1,128)}', space=vmem, size = 0x12000, scoped, tag = 'internal scratch']
  %s0 = inlined_call_operand.hbm [shape: bf16[16,256], index: 0, kind: input, shape index: {}]
  %s1 = inlined_call_operand.hbm [shape: bf16[256,128], index: 1, kind: input, shape index: {}]
  %s2 = inlined_call_operand.vmem [shape: bf16[1,128], index: 2, kind: input, shape index: {}]
  %s3 = inlined_call_operand.hbm [shape: f32[16,128], index: 3, kind: output, shape index: {}]
  %s4 = sld [smem:[#allocation0]]
  $region53: #{tpu_custom_call.1} parent=0
    _
  %s6 = ssub.s32 1, %s4
  %s7 = scalar_select 0, %s6, %s4
  $region1: #{tpu_custom_call.1} parent=0
    #allocation2 [shape = 'u8[8192]{0}', space=vmem, size = 0x2000, scoped, tag = 'input window, operand 0']
    #allocation3 [shape = 's32[2]{0}', space=sflag, size = 0x8, scoped, tag = 'scoped memory for tpu_custom_call.1']
    #allocation4 [shape = 's32[2]{0}', space=sflag, size = 0x8, scoped, tag = 'scoped memory for tpu_custom_call.1']
    #allocation5 [shape = 'u8[65536]{0}', space=vmem, size = 0x10000, scoped, tag = 'input window, operand 1, single buffered']
    #allocation6 [shape = 's32[1]{0}', space=sflag, size = 0x4, scoped, tag = 'scoped memory for tpu_custom_call.1']
    #allocation7 [shape = 'u8[8192]{0}', space=vmem, size = 0x2000, scoped, tag = 'output window, operand 0']
    %8 = vsyncpa [#allocation3], 0
    %s9 = scalar_lea.sflag [#allocation3], 1
    %10 = vsyncpa %s9, 0
    %11 = vsyncpa [#allocation6], 0
    %12 = vsyncpa [#allocation4], 0
    %s13 = scalar_lea.sflag [#allocation4], 1
    %14 = vsyncpa %s13, 0
    loop: start=0, step=1, limit=4
    $region2: #{tpu_custom_call.1} parent=1 // loop_pre_header
      _
    $region3: #{tpu_custom_call.1} parent=1 // loop_header
      %s16 = sphi 0, %s20
      %p17 = scmp.ge.s32.totalorder %s16, 4
      %s26 = sphi 0, %s28
      %s29 = sphi 0, %s26
      %s30 = sphi 0, %s29
      %s46 = sphi 0, %s30
      %s50 = sphi 0, %s50
      %s52 = sphi 0, %s50
      %s53 = sphi 0, %s52
      %s67 = sphi 0, %s53
      %s71 = sphi 0, %s71
      %s73 = sphi 0, %s71
      %s74 = sphi 0, %s73
      %s88 = sphi 0, %s74
      %s94 = sphi 0, %s96
      %s97 = sphi 0, %s94
      %s98 = sphi 0, %s97
      %s114 = sphi 0, %s98
    $region4: #{tpu_custom_call.1} parent=1 // loop_header_branch
      %19 = sbr.rel (%p17) target = $region8
    $region5: #{tpu_custom_call.1} parent=1 // loop_body
      %s21 = ssub.s32 %s16, 1
      %s22 = ssub.s32 %s16, 2
      %s23 = sadd.s32 %s16, 1
      %s24 = ssub.s32 %s16, %s23
      %p25 = scmp.eq.s32.totalorder %s24, 0
      %s27 = sadd.s32 %s26, 1
      %s28 = scalar_select %p25, %s26, %s27
      %p31 = pneg %p25
      %p32 = scmp.eq.s32.totalorder %s16, 1
      %p33 = por %p31, %p32
      %p34 = scmp.ne.s32.totalorder %s26, %s29
      %p35 = scmp.eq.s32.totalorder %s16, 0
      %p36 = por %p34, %p35
      %p37 = scmp.ne.s32.totalorder %s26, %s29
      %p38 = scmp.eq.s32.totalorder %s21, 1
      %p39 = por %p37, %p38
      %p40 = scmp.ne.s32.totalorder %s29, %s30
      %p41 = scmp.eq.s32.totalorder %s21, 0
      %p42 = por %p40, %p41
      %p43 = scmp.ne.s32.totalorder %s29, %s30
      %p44 = scmp.eq.s32.totalorder %s22, 1
      %p45 = por %p43, %p44
      %p47 = scmp.ne.s32.totalorder %s30, %s46
      %p48 = scmp.eq.s32.totalorder %s22, 0
      %p49 = por %p47, %p48
      %s51 = sadd.s32 %s50, 1
      %p54 = scmp.eq.s32.totalorder %s16, 1
      %p55 = scmp.ne.s32.totalorder %s50, %s52
      %p56 = scmp.eq.s32.totalorder %s16, 0
      %p57 = por %p55, %p56
      %p58 = scmp.ne.s32.totalorder %s50, %s52
      %p59 = scmp.eq.s32.totalorder %s21, 1
      %p60 = por %p58, %p59
      %p61 = scmp.ne.s32.totalorder %s52, %s53
      %p62 = scmp.eq.s32.totalorder %s21, 0
      %p63 = por %p61, %p62
      %p64 = scmp.ne.s32.totalorder %s52, %s53
      %p65 = scmp.eq.s32.totalorder %s22, 1
      %p66 = por %p64, %p65
      %p68 = scmp.ne.s32.totalorder %s53, %s67
      %p69 = scmp.eq.s32.totalorder %s22, 0
      %p70 = por %p68, %p69
      %s72 = sadd.s32 %s71, 1
      %p75 = scmp.eq.s32.totalorder %s16, 1
      %p76 = scmp.ne.s32.totalorder %s71, %s73
      %p77 = scmp.eq.s32.totalorder %s16, 0
      %p78 = por %p76, %p77
      %p79 = scmp.ne.s32.totalorder %s71, %s73
      %p80 = scmp.eq.s32.totalorder %s21, 1
      %p81 = por %p79, %p80
      %p82 = scmp.ne.s32.totalorder %s73, %s74
      %p83 = scmp.eq.s32.totalorder %s21, 0
      %p84 = por %p82, %p83
      %p85 = scmp.ne.s32.totalorder %s73, %s74
      %p86 = scmp.eq.s32.totalorder %s22, 1
      %p87 = por %p85, %p86
      %p89 = scmp.ne.s32.totalorder %s74, %s88
      %p90 = scmp.eq.s32.totalorder %s22, 0
      %p91 = por %p89, %p90
      %s92 = ssub.s32 %s16, %s23
      %p93 = scmp.eq.s32.totalorder %s92, 0
      %s95 = sadd.s32 %s94, 1
      %s96 = scalar_select %p93, %s94, %s95
      %p99 = pneg %p93
      %p100 = scmp.eq.s32.totalorder %s16, 1
      %p101 = por %p99, %p100
      %p102 = scmp.ne.s32.totalorder %s94, %s97
      %p103 = scmp.eq.s32.totalorder %s16, 0
      %p104 = por %p102, %p103
      %p105 = scmp.ne.s32.totalorder %s94, %s97
      %p106 = scmp.eq.s32.totalorder %s21, 1
      %p107 = por %p105, %p106
      %p108 = scmp.ne.s32.totalorder %s97, %s98
      %p109 = scmp.eq.s32.totalorder %s21, 0
      %p110 = por %p108, %p109
      %p111 = scmp.ne.s32.totalorder %s97, %s98
      %p112 = scmp.eq.s32.totalorder %s22, 1
      %p113 = por %p111, %p112
      %p115 = scmp.ne.s32.totalorder %s98, %s114
      %p116 = scmp.eq.s32.totalorder %s22, 0
      %p117 = por %p115, %p116
      %p118 = scmp.le.s32.totalorder 1, %s16
      %p119 = scmp.lt.s32.totalorder %s16, 3
      %p120 = pnand %p118, %p119
      %p121 = pneg %p120
      // Predicated region
      $region9: #{tpu_custom_call.1} parent=5 // pred_check
        _
      $region10: #{tpu_custom_call.1} parent=5 // pred_check_branch
        %123 = sbr.rel (%p120) target = $region12
      $region11: #{tpu_custom_call.1} parent=5 // pred_region
        %s124 = ssub.s32 %s16, 1
        // Predicated region
        $region13: #{tpu_custom_call.1} parent=11 // pred_check
          %p125 = pneg %p63
        $region14: #{tpu_custom_call.1} parent=11 // pred_check_branch
          %127 = sbr.rel (%p125) target = $region16
        $region15: #{tpu_custom_call.1} parent=11 // pred_region
          %s129 = ssub.s32 2048, 2048
          %130 = vsyncadd [#allocation6], %s129
          %s131 = sshll.u32 [#allocation5], 4
          %s132 = int_to_ptr.vmem [resolvable:$true] %s131
          %137 = dma.hbm_to_vmem [thread:$0]  %s1, 2048, %s132, [#allocation6], 64, 64, 4
        $region16: #{tpu_custom_call.1} parent=11 // pred_fallthru
          _
        // Predicated region
        $region17: #{tpu_custom_call.1} parent=11 // pred_check
          %p138 = pneg %p84
        $region18: #{tpu_custom_call.1} parent=11 // pred_check_branch
          %140 = sbr.rel (%p138) target = $region20
        $region19: #{tpu_custom_call.1} parent=11 // pred_region
          _
        $region20: #{tpu_custom_call.1} parent=11 // pred_fallthru
          _
      $region12: #{tpu_custom_call.1} parent=5 // pred_fallthru
        _
      %p141 = scmp.lt.s32.totalorder %s16, 2
      // Predicated region
      $region21: #{tpu_custom_call.1} parent=5 // pred_check
        %p142 = pneg %p141
      $region22: #{tpu_custom_call.1} parent=5 // pred_check_branch
        %144 = sbr.rel (%p142) target = $region24
      $region23: #{tpu_custom_call.1} parent=5 // pred_region
        // Predicated region
        $region25: #{tpu_custom_call.1} parent=23 // pred_check
          %p145 = pneg %p36
        $region26: #{tpu_custom_call.1} parent=23 // pred_check_branch
          %147 = sbr.rel (%p145) target = $region28
        $region27: #{tpu_custom_call.1} parent=23 // pred_region
          %s148 = sand.u32 %s26, 1
          %s149 = scalar_lea.sflag [#allocation3], %s148
          %s150 = sand.u32 %s26, 1
          %s151 = smul.addr %s150, 8
          %s152 = scalar_lea.vmem [#allocation2], %s151
          %s154 = ssub.s32 128, 128
          %155 = vsyncadd %s149, %s154
          %s156 = smul.addr %s16, 2
          %s157 = smul.addr %s156, 64
          %s158 = scalar_lea.hbm %s0, %s157
          %s160 = sshll.u32 %s152, 4
          %s161 = int_to_ptr.vmem [resolvable:$true] %s160
          %163 = dma.hbm_to_vmem [thread:$0]  %s158, 128, %s161, %s149
        $region28: #{tpu_custom_call.1} parent=23 // pred_fallthru
          _
      $region24: #{tpu_custom_call.1} parent=5 // pred_fallthru
        _
      %p164 = scmp.le.s32.totalorder 1, %s16
      %p165 = scmp.lt.s32.totalorder %s16, 3
      %p166 = pnand %p164, %p165
      %p167 = pneg %p166
      // Predicated region
      $region29: #{tpu_custom_call.1} parent=5 // pred_check
        _
      $region30: #{tpu_custom_call.1} parent=5 // pred_check_branch
        %169 = sbr.rel (%p166) target = $region32
      $region31: #{tpu_custom_call.1} parent=5 // pred_region
        %s170 = ssub.s32 %s16, 1
        %s171 = sand.u32 %s29, 1
        %s172 = scalar_lea.sflag [#allocation3], %s171
        %s173 = sand.u32 %s29, 1
        %s174 = smul.addr %s173, 8
        %s175 = scalar_lea.vmem [#allocation2], %s174
        // Predicated region
        $region33: #{tpu_custom_call.1} parent=31 // pred_check
          %p176 = pneg %p42
        $region34: #{tpu_custom_call.1} parent=31 // pred_check_branch
          %178 = sbr.rel (%p176) target = $region36
        $region35: #{tpu_custom_call.1} parent=31 // pred_region
          %179 = dma.done %s172, 128
        $region36: #{tpu_custom_call.1} parent=31 // pred_fallthru
          _
        // Predicated region
        $region37: #{tpu_custom_call.1} parent=31 // pred_check
          %p180 = pneg %p63
        $region38: #{tpu_custom_call.1} parent=31 // pred_check_branch
          %182 = sbr.rel (%p180) target = $region40
        $region39: #{tpu_custom_call.1} parent=31 // pred_region
          %183 = dma.done [#allocation6], 2048
        $region40: #{tpu_custom_call.1} parent=31 // pred_fallthru
          _
        %s184 = sand.u32 %s29, 1
        %s185 = scalar_lea.sflag [#allocation3], %s184
        %s186 = sand.u32 %s29, 1
        %s187 = smul.addr %s186, 8
        %s188 = scalar_lea.vmem [#allocation2], %s187
        %p189 = pneg %p42
        %p190 = pneg %p39
        %p191 = pneg %p63
        %p192 = pneg %p60
        %p193 = pneg %p84
        %p194 = pneg %p81
        %p195 = pneg %p110
        %p196 = pneg %p107
        %s197 = sand.u32 %s97, 1
        %s198 = scalar_lea.sflag [#allocation4], %s197
        %s199 = sand.u32 %s97, 1
        %s200 = smul.addr %s199, 8
        %s201 = scalar_lea.vmem [#allocation7], %s200
        %v203 = vld [vmem:[%s175] sm:$0xff]
        %v204 = vld [vmem:[#allocation5] sm:$0xf]
        %v205 = vld [vmem:[#allocation5 + $0x4] sm:$0xf]
        %v206 = vld [vmem:[#allocation5 + $0x8] sm:$0xf]
        %v207 = vld [vmem:[#allocation5 + $0xc] sm:$0xf]
        %v208 = vld [vmem:[#allocation5 + $0x10] sm:$0xf]
        %v209 = vld [vmem:[#allocation5 + $0x14] sm:$0xf]
        %v210 = vld [vmem:[#allocation5 + $0x18] sm:$0xf]
        %v211 = vld [vmem:[#allocation5 + $0x1c] sm:$0xf]
        %v212 = vld [vmem:[#allocation5 + $0x20] sm:$0xf]
        %v213 = vld [vmem:[#allocation5 + $0x24] sm:$0xf]
        %v214 = vld [vmem:[#allocation5 + $0x28] sm:$0xf]
        %v215 = vld [vmem:[#allocation5 + $0x2c] sm:$0xf]
        %v216 = vld [vmem:[#allocation5 + $0x30] sm:$0xf]
        %v217 = vld [vmem:[#allocation5 + $0x34] sm:$0xf]
        %v218 = vld [vmem:[#allocation5 + $0x38] sm:$0xf]
        %v219 = vld [vmem:[#allocation5 + $0x3c] sm:$0xf]
        %v220 = vld [vmem:[#allocation5 + $0x40] sm:$0xf]
        %v221 = vld [vmem:[#allocation5 + $0x44] sm:$0xf]
        %v222 = vld [vmem:[#allocation5 + $0x48] sm:$0xf]
        %v223 = vld [vmem:[#allocation5 + $0x4c] sm:$0xf]
        %v224 = vld [vmem:[#allocation5 + $0x50] sm:$0xf]
        %v225 = vld [vmem:[#allocation5 + $0x54] sm:$0xf]
        %v226 = vld [vmem:[#allocation5 + $0x58] sm:$0xf]
        %v227 = vld [vmem:[#allocation5 + $0x5c] sm:$0xf]
        %v228 = vld [vmem:[#allocation5 + $0x60] sm:$0xf]
        %v229 = vld [vmem:[#allocation5 + $0x64] sm:$0xf]
        %v230 = vld [vmem:[#allocation5 + $0x68] sm:$0xf]
        %v231 = vld [vmem:[#allocation5 + $0x6c] sm:$0xf]
        %v232 = vld [vmem:[#allocation5 + $0x70] sm:$0xf]
        %v233 = vld [vmem:[#allocation5 + $0x74] sm:$0xf]
        %v234 = vld [vmem:[#allocation5 + $0x78] sm:$0xf]
        %v235 = vld [vmem:[#allocation5 + $0x7c] sm:$0xf]
        %v236 = vld [vmem:[%s2] sm:$0x1]
        %v237 = vunpack.c.l.bf16 %v236
        %v238 = vlaneseq
        %v239 = vshrl.u32 %v238, 7
        %v240 = vsub.s32 0, %v239
        %v241 = vrot.slane %v237, %v240
        %v243 = vunpack.c.l.b16 %v203
        %v244 = vunpack.c.h.b16 %v203
        %v245 = vpack.c.b16 %v243, %v243
        %v246 = vpack.c.b16 %v244, %v244
        %v281 = vunpack.c.l.b16 %v204
        %v282 = vunpack.c.l.b16 %v205
        %v283 = vunpack.c.l.b16 %v206
        %v284 = vunpack.c.l.b16 %v207
        %v285 = vunpack.c.l.b16 %v208
        %v286 = vunpack.c.l.b16 %v209
        %v287 = vunpack.c.l.b16 %v210
        %v288 = vunpack.c.l.b16 %v211
        %v289 = vunpack.c.l.b16 %v212
        %v290 = vunpack.c.l.b16 %v213
        %v291 = vunpack.c.l.b16 %v214
        %v292 = vunpack.c.l.b16 %v215
        %v293 = vunpack.c.l.b16 %v216
        %v294 = vunpack.c.l.b16 %v217
        %v295 = vunpack.c.l.b16 %v218
        %v296 = vunpack.c.l.b16 %v219
        %v297 = vunpack.c.l.b16 %v220
        %v298 = vunpack.c.l.b16 %v221
        %v299 = vunpack.c.l.b16 %v222
        %v300 = vunpack.c.l.b16 %v223
        %v301 = vunpack.c.l.b16 %v224
        %v302 = vunpack.c.l.b16 %v225
        %v303 = vunpack.c.l.b16 %v226
        %v304 = vunpack.c.l.b16 %v227
        %v305 = vunpack.c.l.b16 %v228
        %v306 = vunpack.c.l.b16 %v229
        %v307 = vunpack.c.l.b16 %v230
        %v308 = vunpack.c.l.b16 %v231
        %v309 = vunpack.c.l.b16 %v232
        %v310 = vunpack.c.l.b16 %v233
        %v311 = vunpack.c.l.b16 %v234
        %v312 = vunpack.c.l.b16 %v235
        %v313 = vpack.c.b16 %v282, %v281
        %v314 = vpack.c.b16 %v284, %v283
        %v315 = vpack.c.b16 %v286, %v285
        %v316 = vpack.c.b16 %v288, %v287
        %v317 = vpack.c.b16 %v290, %v289
        %v318 = vpack.c.b16 %v292, %v291
        %v319 = vpack.c.b16 %v294, %v293
        %v320 = vpack.c.b16 %v296, %v295
        %v321 = vpack.c.b16 %v298, %v297
        %v322 = vpack.c.b16 %v300, %v299
        %v323 = vpack.c.b16 %v302, %v301
        %v324 = vpack.c.b16 %v304, %v303
        %v325 = vpack.c.b16 %v306, %v305
        %v326 = vpack.c.b16 %v308, %v307
        %v327 = vpack.c.b16 %v310, %v309
        %v328 = vpack.c.b16 %v312, %v311
        %345 = vmatprep.subr.bf16.mxu0 0
        %346 = vmatpush1.bf16.msra.mxu0 %v313
        %347 = vmatprep.subr.bf16.mxu0 0
        %348 = vmatpush1.bf16.msra.mxu0 %v314
        %349 = vmatprep.subr.bf16.mxu0 0
        %350 = vmatpush1.bf16.msra.mxu0 %v315
        %351 = vmatprep.subr.bf16.mxu0 0
        %352 = vmatpush1.bf16.msra.mxu0 %v316
        %353 = vmatprep.subr.bf16.mxu0 0
        %354 = vmatpush1.bf16.msra.mxu0 %v317
        %355 = vmatprep.subr.bf16.mxu0 0
        %356 = vmatpush1.bf16.msra.mxu0 %v318
        %357 = vmatprep.subr.bf16.mxu0 0
        %358 = vmatpush1.bf16.msra.mxu0 %v319
        %359 = vmatprep.subr.bf16.mxu0 0
        %360 = vmatpush1.bf16.msra.mxu0 %v320
        %361 = vmatprep.subr.bf16.mxu0 0
        %362 = vmatpush1.bf16.msra.mxu0 %v321
        %363 = vmatprep.subr.bf16.mxu0 0
        %364 = vmatpush1.bf16.msra.mxu0 %v322
        %365 = vmatprep.subr.bf16.mxu0 0
        %366 = vmatpush1.bf16.msra.mxu0 %v323
        %367 = vmatprep.subr.bf16.mxu0 0
        %368 = vmatpush1.bf16.msra.mxu0 %v324
        %369 = vmatprep.subr.bf16.mxu0 0
        %370 = vmatpush1.bf16.msra.mxu0 %v325
        %371 = vmatprep.subr.bf16.mxu0 0
        %372 = vmatpush1.bf16.msra.mxu0 %v326
        %373 = vmatprep.subr.bf16.mxu0 0
        %374 = vmatpush1.bf16.msra.mxu0 %v327
        %375 = vmatprep.subr.bf16.mxu0 0
        %376 = vmatpush1.bf16.msra.mxu0 %v328
        %377 = vmatprep.mubr.bf16.mxu0 %v246
        %378 = vmatmul.mubr.bf16.gmra.mrb[0].mxu0 %v245
        %v379 = vpop.f32.mrb[0].mxu0
        %v380 = vadd.f32 %v241, %v379
        %v381 = vpop.f32.mrb[0].mxu0
        %v382 = vpop.f32.mrb[0].mxu0
        %v383 = vpop.f32.mrb[0].mxu0
        %384 = vdwg.mxu0
        %385 = vst [vmem:[%s201] sm:$0xff] %v380
        %s386 = sand.u32 %s97, 1
        %s387 = scalar_lea.sflag [#allocation4], %s386
        %s388 = sand.u32 %s97, 1
        %s389 = smul.addr %s388, 8
        %s390 = scalar_lea.vmem [#allocation7], %s389
        // Predicated region
        $region41: #{tpu_custom_call.1} parent=31 // pred_check
          %p391 = pneg %p107
        $region42: #{tpu_custom_call.1} parent=31 // pred_check_branch
          %393 = sbr.rel (%p391) target = $region44
        $region43: #{tpu_custom_call.1} parent=31 // pred_region
          %s395 = ssub.s32 128, 128
          %396 = vsyncadd %s387, %s395
          %s397 = smul.addr %s21, 128
          %s398 = scalar_lea.hbm %s3, %s397
          %s400 = sshll.u32 %s390, 4
          %s401 = int_to_ptr.vmem [resolvable:$true] %s400
          %403 = dma.vmem_to_hbm [thread:$0]  %s401, 128, %s398, %s387
        $region44: #{tpu_custom_call.1} parent=31 // pred_fallthru
          _
      $region32: #{tpu_custom_call.1} parent=5 // pred_fallthru
        _
      %p404 = scmp.le.s32.totalorder 2, %s16
      // Predicated region
      $region45: #{tpu_custom_call.1} parent=5 // pred_check
        %p405 = pneg %p404
      $region46: #{tpu_custom_call.1} parent=5 // pred_check_branch
        %407 = sbr.rel (%p405) target = $region48
      $region47: #{tpu_custom_call.1} parent=5 // pred_region
        %s408 = ssub.s32 %s16, 2
        // Predicated region
        $region49: #{tpu_custom_call.1} parent=47 // pred_check
          %p409 = pneg %p113
        $region50: #{tpu_custom_call.1} parent=47 // pred_check_branch
          %411 = sbr.rel (%p409) target = $region52
        $region51: #{tpu_custom_call.1} parent=47 // pred_region
          %s412 = sand.u32 %s98, 1
          %s413 = scalar_lea.sflag [#allocation4], %s412
          %s414 = sand.u32 %s98, 1
          %s415 = smul.addr %s414, 8
          %s416 = scalar_lea.vmem [#allocation7], %s415
          %417 = dma.done %s413, 128
        $region52: #{tpu_custom_call.1} parent=47 // pred_fallthru
          _
      $region48: #{tpu_custom_call.1} parent=5 // pred_fallthru
        _
    $region6: #{tpu_custom_call.1} parent=1 // loop_footer
      %s20 = sadd.s32 1, %s16
    $region7: #{tpu_custom_call.1} parent=1 // loop_footer_branch
      %15 = sbr.rel target = $region3
    $region8: #{tpu_custom_call.1} parent=1 // loop_exit
      _
    %418 = vsyncpa [#allocation3], 1
    %s419 = scalar_lea.sflag [#allocation3], 1
    %420 = vsyncpa %s419, 1
    %421 = vsyncpa [#allocation6], 1
    %422 = vsyncpa [#allocation4], 1
    %s423 = scalar_lea.sflag [#allocation4], 1
    %424 = vsyncpa %s423, 1

</llo_original>
